<compile_context>
chip_gen: v7x
topology: tpu7x:2x2x1
jax: 0.10.0
libtpu: 0.0.40
codegen_flags: <defaults>
</compile_context>

<pallas_src>
import functools

import jax
import jax.numpy as jnp
from jax.experimental import pallas as pl
from jax.experimental.pallas import tpu as pltpu


def _vmem_capacity_bytes():
    """Physical VMEM per core; used to size tiles per TPU generation."""
    try:
        info = pltpu.get_tpu_info()
        for name in ("vmem_capacity_bytes", "vmem_size_bytes", "vmem_bytes"):
            v = getattr(info, name, None)
            if v:
                return int(v)
    except Exception:
        pass
    return 64 * 1024 * 1024  # conservative fallback (v7x per-TC VMEM)


def _round_up(x, m):
    return ((x + m - 1) // m) * m


# ---------------------------------------------------------------------------
# Path A: full feature dim per block (block = (block_rows, D) fits in VMEM)
# ---------------------------------------------------------------------------
def _l2norm_kernel(x_ref, o_ref, *, epsilon):
    # x_ref: (block_rows, D) tile. Per-row reduction over the lane axis.
    x = x_ref[...].astype(jnp.float32)
    sq_sum = jnp.sum(x * x, axis=1, keepdims=True)                 # (rows, 1)
    # One exact reciprocal per row (EUP), then a broadcast multiply (VPU).
    inv = pl.reciprocal(jnp.sqrt(sq_sum) + epsilon, approx=False)
    o_ref[...] = (x * inv).astype(o_ref.dtype)


# ---------------------------------------------------------------------------
# Path B (very large D): two passes over D tiles.
# ---------------------------------------------------------------------------
def _sumsq_kernel(x_ref, ss_ref, acc_ref, *, D, block_d):
    k = pl.program_id(1)

    @pl.when(k == 0)
    def _():
        acc_ref[...] = jnp.zeros_like(acc_ref)

    x = x_ref[...].astype(jnp.float32)
    # Mask columns past D in the (possibly partial) last D tile: they would
    # otherwise pollute the per-row reduction.
    col = k * block_d + jax.lax.broadcasted_iota(jnp.int32, x.shape, 1)
    x = jnp.where(col < D, x, 0.0)
    acc_ref[...] += jnp.sum(x * x, axis=1, keepdims=True)

    @pl.when(k == pl.num_programs(1) - 1)
    def _():
        ss_ref[...] = acc_ref[...]


def _normalize_kernel(x_ref, ss_ref, o_ref, *, epsilon):
    x = x_ref[...].astype(jnp.float32)
    inv = pl.reciprocal(jnp.sqrt(ss_ref[...]) + epsilon, approx=False)
    o_ref[...] = (x * inv).astype(o_ref.dtype)


# ---------------------------------------------------------------------------
# Wrapper
# ---------------------------------------------------------------------------
def l2norm(x, epsilon=1e-07):
    assert x.ndim == 2, f"Input dimension requires 2, but get {x.ndim}"
    B, D = x.shape
    itemsize = jnp.dtype(x.dtype).itemsize
    # Sublane packing: 8 rows for 32-bit, 16 for bf16, 32 for int8/fp8.
    sublane_mult = 8 * (4 // itemsize) if itemsize in (1, 2, 4) else 8

    vmem_cap = _vmem_capacity_bytes()
    vmem_limit = int(vmem_cap * 0.75)   # raise the scoped VMEM limit (esp. v5e)
    budget = int(vmem_cap * 0.5)        # tile budget; headroom for compiler use

    # Per row of a full-D block: in + out (double-buffered) + f32 working copies.
    bytes_per_row = D * (2 * 2 * itemsize + 2 * 4)

    if sublane_mult * bytes_per_row <= budget:
        # ---- Path A: one block spans the whole feature dim -----------------
        block_rows = min(budget // bytes_per_row, 1024)
        block_rows = max(sublane_mult, (block_rows // sublane_mult) * sublane_mult)
        block_rows = min(block_rows, _round_up(B, sublane_mult))
        grid = (pl.cdiv(B, block_rows),)

        return pl.pallas_call(
            functools.partial(_l2norm_kernel, epsilon=epsilon),
            out_shape=jax.ShapeDtypeStruct((B, D), x.dtype),
            grid_spec=pltpu.PrefetchScalarGridSpec(
                num_scalar_prefetch=0,
                grid=grid,
                in_specs=[pl.BlockSpec((block_rows, D), lambda i: (i, 0))],
                out_specs=pl.BlockSpec((block_rows, D), lambda i: (i, 0)),
            ),
            compiler_params=pltpu.CompilerParams(
                dimension_semantics=("parallel",),
                vmem_limit_bytes=vmem_limit,
            ),
        )(x)

    # ---- Path B: D too large for a single block; tile D (two passes) -------
    block_rows = min(8 * sublane_mult, 1024)
    block_rows = min(block_rows, _round_up(B, sublane_mult))
    per_elem = 2 * 2 * itemsize + 2 * 4
    block_d = max(128, (budget // (block_rows * per_elem) // 128) * 128)
    block_d = min(block_d, _round_up(D, 128))
    nb = pl.cdiv(B, block_rows)
    nd = pl.cdiv(D, block_d)

    sumsq = pl.pallas_call(
        functools.partial(_sumsq_kernel, D=D, block_d=block_d),
        out_shape=jax.ShapeDtypeStruct((B, 1), jnp.float32),
        grid_spec=pltpu.PrefetchScalarGridSpec(
            num_scalar_prefetch=0,
            grid=(nb, nd),
            in_specs=[pl.BlockSpec((block_rows, block_d), lambda i, k: (i, k))],
            out_specs=pl.BlockSpec((block_rows, 1), lambda i, k: (i, 0)),
            scratch_shapes=[pltpu.VMEM((block_rows, 1), jnp.float32)],
        ),
        compiler_params=pltpu.CompilerParams(
            dimension_semantics=("parallel", "arbitrary"),
            vmem_limit_bytes=vmem_limit,
        ),
    )(x)

    return pl.pallas_call(
        functools.partial(_normalize_kernel, epsilon=epsilon),
        out_shape=jax.ShapeDtypeStruct((B, D), x.dtype),
        grid_spec=pltpu.PrefetchScalarGridSpec(
            num_scalar_prefetch=0,
            grid=(nb, nd),
            in_specs=[
                pl.BlockSpec((block_rows, block_d), lambda i, k: (i, k)),
                pl.BlockSpec((block_rows, 1), lambda i, k: (i, 0)),
            ],
            out_specs=pl.BlockSpec((block_rows, block_d), lambda i, k: (i, k)),
        ),
        compiler_params=pltpu.CompilerParams(
            dimension_semantics=("parallel", "parallel"),
            vmem_limit_bytes=vmem_limit,
        ),
    )(x, sumsq)


if __name__ == "__main__":
    key = jax.random.PRNGKey(0)
    k1, k2 = jax.random.split(key)

    def ref(x, eps=1e-07):
        xf = x.astype(jnp.float32)
        norm = jnp.linalg.norm(xf, ord=2, axis=1, keepdims=True)
        return (xf / (norm + eps)).astype(x.dtype)

    # Small 2-D input implied by the module's forward assert.
    x1 = jax.random.normal(k1, (8, 32), dtype=jnp.float32)
    y1 = l2norm(x1)
    jax.block_until_ready(y1)
    assert jnp.allclose(y1, ref(x1), atol=1e-5, rtol=1e-5), "mismatch vs reference (8,32)"

    # Non-divisible batch: exercises the padding-free partial last block path.
    x2 = jax.random.normal(k2, (13, 160), dtype=jnp.float32)
    y2 = l2norm(x2)
    jax.block_until_ready(y2)
    assert jnp.allclose(y2, ref(x2), atol=1e-5, rtol=1e-5), "mismatch vs reference (13,160)"

    print("KERNEL_OK")
</pallas_src>

<mosaic_0001>
module attributes {stable_mosaic.version = 11 : i64} {
  func.func @_l2norm_kernel(%arg0: i32, %arg1: memref<8x32xf32, #tpu.memory_space<vmem>>, %arg2: memref<8x32xf32, #tpu.memory_space<vmem>>) attributes {dimension_semantics = [#tpu.dimension_semantics<parallel>], iteration_bounds = array<i64: 1>, scalar_prefetch = 0 : i64, scratch_operands = 0 : i64, tpu.core_type = #tpu.core_type<tc>, window_params = [{transform_indices = @transform_0, window_bounds = array<i64: 8, 32>}, {transform_indices = @transform_1, window_bounds = array<i64: 8, 32>}]} {
    %c0 = arith.constant 0 : index
    %c0_0 = arith.constant 0 : index
    %0 = vector.load %arg1[%c0, %c0_0] : memref<8x32xf32, #tpu.memory_space<vmem>>, vector<8x32xf32>
    %1 = arith.mulf %0, %0 : vector<8x32xf32>
    %cst = arith.constant dense<0.000000e+00> : vector<8xf32>
    %2 = vector.multi_reduction <add>, %1, %cst [1] : vector<8x32xf32> to vector<8xf32>
    %3 = vector.shape_cast %2 : vector<8xf32> to vector<8x1xf32>
    %4 = math.sqrt %3 : vector<8x1xf32>
    %cst_1 = arith.constant 1.000000e-07 : f32
    %5 = vector.broadcast %cst_1 : f32 to vector<8x1xf32>
    %6 = arith.addf %4, %5 : vector<8x1xf32>
    %7 = tpu.reciprocal %6 : vector<8x1xf32> -> vector<8x1xf32>
    %8 = vector.broadcast %7 : vector<8x1xf32> to vector<8x32xf32>
    %9 = arith.mulf %0, %8 : vector<8x32xf32>
    %c0_2 = arith.constant 0 : index
    %c0_3 = arith.constant 0 : index
    %10 = vector.load %arg2[%c0_2, %c0_3] : memref<8x32xf32, #tpu.memory_space<vmem>>, vector<8x32xf32>
    tpu.vector_store %arg2[%c0_2, %c0_3], %9 {strides = array<i32>} : memref<8x32xf32, #tpu.memory_space<vmem>>, vector<8x32xf32>,
    return
  }
  func.func @transform_0(%arg0: i32) -> (i32, i32) {
    %c0_i32 = arith.constant 0 : i32
    %c0_i32_0 = arith.constant 0 : i32
    return %arg0, %c0_i32 : i32, i32
  }
  func.func @transform_1(%arg0: i32) -> (i32, i32) {
    %c0_i32 = arith.constant 0 : i32
    %c0_i32_0 = arith.constant 0 : i32
    return %arg0, %c0_i32 : i32, i32
  }
}

</mosaic_0001>

<llo_original>
// kernel: tpu_custom_call.1
$region0: #{tpu_custom_call.1}
  #allocation0 [shape = 'u32[]', space=smem, size = 0x4, offset = 0x4, fixed_abs, tag = 'smem constant byte address 0x4 - core index']
  #allocation1 [shape = 'u32[144,128]{1,0:T(1,128)}', space=vmem, size = 0x12000, scoped, tag = 'internal scratch']
  %s0 = inlined_call_operand.hbm [shape: f32[8,32], index: 0, kind: input, shape index: {}]
  %s1 = inlined_call_operand.hbm [shape: f32[8,32], index: 1, kind: output, shape index: {}]
  %s2 = sld [smem:[#allocation0]]
  $region18: #{tpu_custom_call.1} parent=0
    _
  %s4 = ssub.s32 1, %s2
  %s5 = scalar_select 0, %s4, %s2
  $region1: #{tpu_custom_call.1} parent=0
    #allocation2 [shape = 'u8[4096]{0}', space=vmem, size = 0x1000, scoped, tag = 'input window, operand 0, single buffered']
    #allocation3 [shape = 's32[1]{0}', space=sflag, size = 0x4, scoped, tag = 'scoped memory for tpu_custom_call.1']
    #allocation4 [shape = 's32[1]{0}', space=sflag, size = 0x4, scoped, tag = 'scoped memory for tpu_custom_call.1']
    #allocation5 [shape = 'u8[4096]{0}', space=vmem, size = 0x1000, scoped, tag = 'output window, operand 0, single buffered']
    %6 = vsyncpa [#allocation3], 0
    %7 = vsyncpa [#allocation4], 0
    // Predicated region
    $region2: #{tpu_custom_call.1} parent=1 // pred_check
      _
    $region3: #{tpu_custom_call.1} parent=1 // pred_check_branch
      %9 = sbr.rel (0) target = $region5
    $region4: #{tpu_custom_call.1} parent=1 // pred_region
      %s11 = ssub.s32 128, 128
      %12 = vsyncadd [#allocation3], %s11
      %s14 = sshll.u32 [#allocation2], 4
      %s15 = int_to_ptr.vmem [resolvable:$true] %s14
      %17 = dma.hbm_to_vmem [thread:$0]  %s0, 128, %s15, [#allocation3]
    $region5: #{tpu_custom_call.1} parent=1 // pred_fallthru
      _
    // Predicated region
    $region6: #{tpu_custom_call.1} parent=1 // pred_check
      _
    $region7: #{tpu_custom_call.1} parent=1 // pred_check_branch
      %19 = sbr.rel (0) target = $region9
    $region8: #{tpu_custom_call.1} parent=1 // pred_region
      %20 = dma.done [#allocation3], 128
    $region9: #{tpu_custom_call.1} parent=1 // pred_fallthru
      _
    %v21 = vld [vmem:[#allocation2] sm:$0xff]
    %v22 = vmul.f32 %v21, %v21
    %vm23 = vcmask 261120
    %v24 = vsel %vm23, %v22, 0.0
    %25 = vadd.xlane.f32.xlu0 %v24
    %v26 = vpop.xlane.xlu0 %25
    %v27 = vrsqrt.pop %v26
    %v28 = vmul.f32 %v26, %v27
    %vm29 = vcmp.eq.f32.partialorder %v26, inf
    %v30 = vsel %vm29, %v26, %v28
    %vm31 = vcmp.eq.f32.partialorder %v26, 0.0
    %v32 = vand.u32 %v26, 2147483648
    %v33 = vsel %vm31, %v32, %v30
    %v34 = vadd.f32 %v33, 1e-07
    %v35 = vrcp.pop %v34
    %v36 = vmul.f32 %v21, %v35
    %37 = vst.msk [vmem:[#allocation5] sm:$0xff] %vm23, %v36
    // Predicated region
    $region10: #{tpu_custom_call.1} parent=1 // pred_check
      _
    $region11: #{tpu_custom_call.1} parent=1 // pred_check_branch
      %39 = sbr.rel (0) target = $region13
    $region12: #{tpu_custom_call.1} parent=1 // pred_region
      %s41 = ssub.s32 128, 128
      %42 = vsyncadd [#allocation4], %s41
      %s44 = sshll.u32 [#allocation5], 4
      %s45 = int_to_ptr.vmem [resolvable:$true] %s44
      %47 = dma.vmem_to_hbm [thread:$0]  %s45, 128, %s1, [#allocation4]
    $region13: #{tpu_custom_call.1} parent=1 // pred_fallthru
      _
    // Predicated region
    $region14: #{tpu_custom_call.1} parent=1 // pred_check
      _
    $region15: #{tpu_custom_call.1} parent=1 // pred_check_branch
      %49 = sbr.rel (0) target = $region17
    $region16: #{tpu_custom_call.1} parent=1 // pred_region
      %50 = dma.done [#allocation4], 128
    $region17: #{tpu_custom_call.1} parent=1 // pred_fallthru
      _
    %51 = vsyncpa [#allocation3], 1
    %52 = vsyncpa [#allocation4], 1

</llo_original>
